<compile_context>
chip_gen: v6e
topology: v6e:2x2x1
jax: 0.10.0
libtpu: 0.0.40
codegen_flags: <defaults>
</compile_context>

<pallas_src>
import functools

import jax
import jax.numpy as jnp
from jax.experimental import pallas as pl
from jax.experimental.pallas import tpu as pltpu


_LANES = 128
_DEFAULT_TILE = 32 * 1024   # lanes per grid step; ~2 MiB total VMEM at M=4 (fits v5e/v6e/v7x)


def _round_up(x, m):
    return ((x + m - 1) // m) * m


def cheby_poly(x, M):
    """x: [N] -> [N, M+1] chebyshev polynomial matrix (plain-JAX glue)."""
    cols = [jnp.ones_like(x)]
    if M >= 1:
        cols.append(x)
    for _ in range(2, M + 1):
        cols.append(2.0 * x * cols[-1] - cols[-2])
    return jnp.stack(cols[: M + 1], axis=-1)


def _pulse_kernel(c_ref, b_ref, *rest, mp1, dt):
    """val = exp(sum_k c[k] * t_k) + b ; integral = sum(val * active) * dt.

    c_ref: SMEM (M+1,), b_ref: SMEM (1,)
    rest = (t_0..t_M [1,TILE], active [1,TILE],           # inputs  (VMEM)
            val_out [1,TILE], integral_out [1,1],         # outputs (VMEM)
            acc [1,TILE])                                  # scratch (VMEM)
    """
    t_refs = rest[:mp1]
    a_ref = rest[mp1]
    val_ref = rest[mp1 + 1]
    integral_ref = rest[mp1 + 2]
    acc_ref = rest[mp1 + 3]

    step = pl.program_id(0)

    @pl.when(step == 0)
    def _init():
        acc_ref[...] = jnp.zeros_like(acc_ref)

    # Per-order FMA with SMEM scalar coefficients: pure VPU, full 128-lane vregs.
    poly = c_ref[0] * t_refs[0][...]
    for k in range(1, mp1):
        poly = poly + c_ref[k] * t_refs[k][...]
    val = jnp.exp(poly) + b_ref[0]
    val_ref[...] = val

    # Lane-wide running partial sum; the expensive cross-lane reduce happens
    # exactly once in the epilogue below.
    acc_ref[...] += val * a_ref[...]

    @pl.when(step == pl.num_programs(0) - 1)
    def _finalize():
        integral_ref[...] = jnp.sum(acc_ref[...], axis=(0, 1), keepdims=True) * dt


def _run_pulse(t_rows, active_cols, c, b, dt, tile_max):
    """t_rows: [ntot, M+1] f32 sample stream; active_cols: [ntot] f32 weights.

    Returns (vals[padded] = exp(poly)+b per sample, integral scalar).
    """
    ntot, mp1 = t_rows.shape
    tile_max = max(_LANES, _round_up(int(tile_max), _LANES))
    tile = min(tile_max, _round_up(ntot, _LANES))
    padded = _round_up(ntot, tile)
    n_tiles = padded // tile

    # Transpose to lane-dense per-order rows; zero-pad the sample axis.
    t_pad = jnp.pad(t_rows.astype(jnp.float32), ((0, padded - ntot), (0, 0)))
    t_cols = [t_pad[:, k].reshape(1, padded) for k in range(mp1)]
    a_pad = jnp.pad(active_cols.astype(jnp.float32),
                    (0, padded - ntot)).reshape(1, padded)

    row_spec = pl.BlockSpec((1, tile), lambda i: (0, i))
    smem_spec = pl.BlockSpec(memory_space=pltpu.MemorySpace.SMEM)

    vals, integral = pl.pallas_call(
        functools.partial(_pulse_kernel, mp1=mp1, dt=float(dt)),
        out_shape=(jax.ShapeDtypeStruct((1, padded), jnp.float32),
                   jax.ShapeDtypeStruct((1, 1), jnp.float32)),
        grid=(n_tiles,),
        in_specs=[smem_spec, smem_spec] + [row_spec] * mp1 + [row_spec],
        out_specs=(row_spec, pl.BlockSpec((1, 1), lambda i: (0, 0))),
        scratch_shapes=[pltpu.VMEM((1, tile), jnp.float32)],
        compiler_params=pltpu.CompilerParams(
            # Single grid axis carries the integral accumulation -> arbitrary.
            dimension_semantics=("arbitrary",)),
    )(c, b, *t_cols, a_pad)
    return vals[0], integral[0, 0]


class FitPulse:
    def __init__(self, M, t_min, t_max):
        self.M = M
        self.t_min = float(t_min)
        self.t_max = float(t_max)
        # deterministic parameter init, matching torch.nn.Parameter defaults in __init__
        self.C = -1.0 * jnp.ones((M + 1, 1), dtype=jnp.float32)
        self.B = jnp.ones((1,), dtype=jnp.float32)

    def tstamp_condition(self, t):
        t_norm = (t - self.t_min) / (self.t_max - self.t_min)
        return cheby_poly(t_norm, self.M)

    def forward(self, intgrl_N, active_ratio_hst, t, t_intgrl, discrete_loss,
                cheby=True, tile_max=_DEFAULT_TILE):
        t_poly_cheb = t if cheby else self.tstamp_condition(t)
        mp1 = self.M + 1
        c = self.C.reshape(mp1).astype(jnp.float32)
        b = self.B.reshape(1).astype(jnp.float32)
        # np.linspace(t_min, t_max, intgrl_N[+1], ...) retstep in both branches:
        dt = (self.t_max - self.t_min) / intgrl_N

        if not discrete_loss:
            N = t_poly_cheb.shape[0]
            Nf = t_intgrl.shape[0]
            # Fuse the model-eval rows and the integration rows into one stream;
            # active weight 0 for model rows (and padding) keeps the integral exact.
            t_rows = jnp.concatenate(
                [t_poly_cheb.astype(jnp.float32), t_intgrl.astype(jnp.float32)],
                axis=0)
            active = jnp.concatenate(
                [jnp.zeros((N,), jnp.float32),
                 active_ratio_hst.reshape(-1).astype(jnp.float32)], axis=0)
            vals, integral = _run_pulse(t_rows, active, c, b, dt, tile_max)
            model_out = vals[:N].reshape(N, 1)
            return model_out, integral
        else:
            Nf = t_intgrl.shape[0]
            active = jnp.zeros((Nf,), jnp.float32)  # integral discarded here
            vals, _ = _run_pulse(t_intgrl.astype(jnp.float32), active, c, b,
                                 dt, tile_max)
            fine = vals[:Nf].reshape(active_ratio_hst.shape)
            return fine, dt


if __name__ == "__main__":
    M = 4
    t_min, t_max = 0.0, 1.0e-3

    model = FitPulse(M, t_min, t_max)
    key = jax.random.PRNGKey(0)
    k1, k2, k3, k4 = jax.random.split(key, 4)

    C = model.C.astype(jnp.float32)
    B = model.B.astype(jnp.float32)

    # --- small case (single tile), both branches ---
    N, intgrl_N = 16, 32
    t = jax.random.uniform(k1, (N,), jnp.float32, minval=t_min, maxval=t_max)
    active_ratio = jax.random.uniform(k2, (intgrl_N, 1), jnp.float32)
    t_cheb = model.tstamp_condition(t)                              # [N, M+1]
    t_fine = jnp.linspace(0.0, 1.0, intgrl_N, endpoint=False)
    t_intgrl = cheby_poly(t_fine, M)                                # [intgrl_N, M+1]

    model_out, integral_out = model.forward(
        intgrl_N, active_ratio, t_cheb, t_intgrl, discrete_loss=False, cheby=True)
    fine_out, dt_out = model.forward(
        intgrl_N, active_ratio, t_cheb, t_intgrl, discrete_loss=True, cheby=True)
    jax.block_until_ready((model_out, integral_out, fine_out))

    dt = (t_max - t_min) / intgrl_N
    ref_model = jnp.exp(t_cheb @ C) + B
    ref_fine = jnp.exp(t_intgrl @ C) + B
    ref_integral = jnp.sum(ref_fine * active_ratio) * dt
    assert jnp.allclose(model_out, ref_model, rtol=1e-5, atol=1e-6)
    assert jnp.allclose(integral_out, ref_integral, rtol=1e-5, atol=1e-6)
    assert jnp.allclose(fine_out, ref_fine, rtol=1e-5, atol=1e-6)
    assert abs(dt_out - dt) < 1e-12

    # --- multi-tile case (exercises grid pipelining + integral accumulator) ---
    N2, intgrl_N2 = 200, 384
    t2 = jax.random.uniform(k3, (N2,), jnp.float32, minval=t_min, maxval=t_max)
    active2 = jax.random.uniform(k4, (intgrl_N2, 1), jnp.float32)
    t_cheb2 = model.tstamp_condition(t2)
    t_fine2 = jnp.linspace(0.0, 1.0, intgrl_N2, endpoint=False)
    t_intgrl2 = cheby_poly(t_fine2, M)

    model_out2, integral_out2 = model.forward(
        intgrl_N2, active2, t_cheb2, t_intgrl2, discrete_loss=False, cheby=True,
        tile_max=128)   # small tile to force several grid steps at test sizes
    jax.block_until_ready((model_out2, integral_out2))

    dt2 = (t_max - t_min) / intgrl_N2
    ref_model2 = jnp.exp(t_cheb2 @ C) + B
    ref_int2 = jnp.sum((jnp.exp(t_intgrl2 @ C) + B) * active2) * dt2
    assert jnp.allclose(model_out2, ref_model2, rtol=1e-5, atol=1e-6)
    assert jnp.allclose(integral_out2, ref_int2, rtol=1e-5, atol=1e-6)

    print("KERNEL_OK")
</pallas_src>

<mosaic_0001>
module attributes {stable_mosaic.version = 11 : i64} {
  func.func @_pulse_kernel(%arg0: i32, %arg1: memref<5xf32, #tpu.memory_space<smem>>, %arg2: memref<1xf32, #tpu.memory_space<smem>>, %arg3: memref<1x128xf32, #tpu.memory_space<vmem>>, %arg4: memref<1x128xf32, #tpu.memory_space<vmem>>, %arg5: memref<1x128xf32, #tpu.memory_space<vmem>>, %arg6: memref<1x128xf32, #tpu.memory_space<vmem>>, %arg7: memref<1x128xf32, #tpu.memory_space<vmem>>, %arg8: memref<1x128xf32, #tpu.memory_space<vmem>>, %arg9: memref<1x128xf32, #tpu.memory_space<vmem>>, %arg10: memref<1x1xf32, #tpu.memory_space<vmem>>, %arg11: memref<1x128xf32, #tpu.memory_space<vmem>>) attributes {dimension_semantics = [#tpu.dimension_semantics<arbitrary>], iteration_bounds = array<i64: 1>, scalar_prefetch = 0 : i64, scratch_operands = 1 : i64, tpu.core_type = #tpu.core_type<tc>, window_params = [{transform_indices = @transform_0, window_bounds = array<i64: 5>}, {transform_indices = @transform_1, window_bounds = array<i64: 1>}, {transform_indices = @transform_2, window_bounds = array<i64: 1, 128>}, {transform_indices = @transform_3, window_bounds = array<i64: 1, 128>}, {transform_indices = @transform_4, window_bounds = array<i64: 1, 128>}, {transform_indices = @transform_5, window_bounds = array<i64: 1, 128>}, {transform_indices = @transform_6, window_bounds = array<i64: 1, 128>}, {transform_indices = @transform_7, window_bounds = array<i64: 1, 128>}, {transform_indices = @transform_8, window_bounds = array<i64: 1, 128>}, {pipeline_mode = #tpu.pipeline_mode<synchronous>, transform_indices = @transform_9, window_bounds = array<i64: 1, 1>}]} {
    %c0_i32 = arith.constant 0 : i32
    %0 = arith.cmpi eq, %arg0, %c0_i32 : i32
    %1 = arith.extui %0 : i1 to i32
    %c0_i32_0 = arith.constant 0 : i32
    %2 = arith.cmpi ne, %1, %c0_i32_0 : i32
    scf.if %2 {
      %cst = arith.constant 0.000000e+00 : f32
      %40 = vector.broadcast %cst : f32 to vector<1x128xf32>
      %c0_22 = arith.constant 0 : index
      %c0_23 = arith.constant 0 : index
      %41 = vector.load %arg11[%c0_22, %c0_23] : memref<1x128xf32, #tpu.memory_space<vmem>>, vector<1x128xf32>
      tpu.vector_store %arg11[%c0_22, %c0_23], %40 {strides = array<i32>} : memref<1x128xf32, #tpu.memory_space<vmem>>, vector<1x128xf32>,
    } else {
    }
    %c0 = arith.constant 0 : index
    %3 = memref.load %arg1[%c0] : memref<5xf32, #tpu.memory_space<smem>>
    %c0_1 = arith.constant 0 : index
    %c0_2 = arith.constant 0 : index
    %4 = vector.load %arg3[%c0_1, %c0_2] : memref<1x128xf32, #tpu.memory_space<vmem>>, vector<1x128xf32>
    %5 = vector.broadcast %3 : f32 to vector<1x128xf32>
    %6 = arith.mulf %5, %4 : vector<1x128xf32>
    %c1 = arith.constant 1 : index
    %7 = memref.load %arg1[%c1] : memref<5xf32, #tpu.memory_space<smem>>
    %c0_3 = arith.constant 0 : index
    %c0_4 = arith.constant 0 : index
    %8 = vector.load %arg4[%c0_3, %c0_4] : memref<1x128xf32, #tpu.memory_space<vmem>>, vector<1x128xf32>
    %9 = vector.broadcast %7 : f32 to vector<1x128xf32>
    %10 = arith.mulf %9, %8 : vector<1x128xf32>
    %11 = arith.addf %6, %10 : vector<1x128xf32>
    %c2 = arith.constant 2 : index
    %12 = memref.load %arg1[%c2] : memref<5xf32, #tpu.memory_space<smem>>
    %c0_5 = arith.constant 0 : index
    %c0_6 = arith.constant 0 : index
    %13 = vector.load %arg5[%c0_5, %c0_6] : memref<1x128xf32, #tpu.memory_space<vmem>>, vector<1x128xf32>
    %14 = vector.broadcast %12 : f32 to vector<1x128xf32>
    %15 = arith.mulf %14, %13 : vector<1x128xf32>
    %16 = arith.addf %11, %15 : vector<1x128xf32>
    %c3 = arith.constant 3 : index
    %17 = memref.load %arg1[%c3] : memref<5xf32, #tpu.memory_space<smem>>
    %c0_7 = arith.constant 0 : index
    %c0_8 = arith.constant 0 : index
    %18 = vector.load %arg6[%c0_7, %c0_8] : memref<1x128xf32, #tpu.memory_space<vmem>>, vector<1x128xf32>
    %19 = vector.broadcast %17 : f32 to vector<1x128xf32>
    %20 = arith.mulf %19, %18 : vector<1x128xf32>
    %21 = arith.addf %16, %20 : vector<1x128xf32>
    %c4 = arith.constant 4 : index
    %22 = memref.load %arg1[%c4] : memref<5xf32, #tpu.memory_space<smem>>
    %c0_9 = arith.constant 0 : index
    %c0_10 = arith.constant 0 : index
    %23 = vector.load %arg7[%c0_9, %c0_10] : memref<1x128xf32, #tpu.memory_space<vmem>>, vector<1x128xf32>
    %24 = vector.broadcast %22 : f32 to vector<1x128xf32>
    %25 = arith.mulf %24, %23 : vector<1x128xf32>
    %26 = arith.addf %21, %25 : vector<1x128xf32>
    %27 = math.exp %26 : vector<1x128xf32>
    %c0_11 = arith.constant 0 : index
    %28 = memref.load %arg2[%c0_11] : memref<1xf32, #tpu.memory_space<smem>>
    %29 = vector.broadcast %28 : f32 to vector<1x128xf32>
    %30 = arith.addf %27, %29 : vector<1x128xf32>
    %c0_12 = arith.constant 0 : index
    %c0_13 = arith.constant 0 : index
    %31 = vector.load %arg9[%c0_12, %c0_13] : memref<1x128xf32, #tpu.memory_space<vmem>>, vector<1x128xf32>
    tpu.vector_store %arg9[%c0_12, %c0_13], %30 {strides = array<i32>} : memref<1x128xf32, #tpu.memory_space<vmem>>, vector<1x128xf32>,
    %c0_14 = arith.constant 0 : index
    %c0_15 = arith.constant 0 : index
    %32 = vector.load %arg11[%c0_14, %c0_15] : memref<1x128xf32, #tpu.memory_space<vmem>>, vector<1x128xf32>
    %c0_16 = arith.constant 0 : index
    %c0_17 = arith.constant 0 : index
    %33 = vector.load %arg8[%c0_16, %c0_17] : memref<1x128xf32, #tpu.memory_space<vmem>>, vector<1x128xf32>
    %34 = arith.mulf %30, %33 : vector<1x128xf32>
    %35 = arith.addf %32, %34 : vector<1x128xf32>
    %c0_18 = arith.constant 0 : index
    %c0_19 = arith.constant 0 : index
    %36 = vector.load %arg11[%c0_18, %c0_19] : memref<1x128xf32, #tpu.memory_space<vmem>>, vector<1x128xf32>
    tpu.vector_store %arg11[%c0_18, %c0_19], %35 {strides = array<i32>} : memref<1x128xf32, #tpu.memory_space<vmem>>, vector<1x128xf32>,
    %c0_i32_20 = arith.constant 0 : i32
    %37 = arith.cmpi eq, %arg0, %c0_i32_20 : i32
    %38 = arith.extui %37 : i1 to i32
    %c0_i32_21 = arith.constant 0 : i32
    %39 = arith.cmpi ne, %38, %c0_i32_21 : i32
    scf.if %39 {
      %c0_22 = arith.constant 0 : index
      %c0_23 = arith.constant 0 : index
      %40 = vector.load %arg11[%c0_22, %c0_23] : memref<1x128xf32, #tpu.memory_space<vmem>>, vector<1x128xf32>
      %41 = vector.shape_cast %40 : vector<1x128xf32> to vector<1x1x128xf32>
      %cst = arith.constant dense<0.000000e+00> : vector<1xf32>
      %42 = vector.multi_reduction <add>, %41, %cst [1, 2] : vector<1x1x128xf32> to vector<1xf32>
      %43 = vector.shape_cast %42 : vector<1xf32> to vector<1x1x1xf32>
      %44 = vector.extract %43[0, 0, 0] : f32 from vector<1x1x1xf32>
      %45 = vector.broadcast %44 : f32 to vector<1x1xf32>
      %cst_24 = arith.constant 3.125000e-05 : f32
      %46 = vector.broadcast %cst_24 : f32 to vector<1x1xf32>
      %47 = arith.mulf %45, %46 : vector<1x1xf32>
      %c0_25 = arith.constant 0 : index
      %c0_26 = arith.constant 0 : index
      %48 = vector.load %arg10[%c0_25, %c0_26] : memref<1x1xf32, #tpu.memory_space<vmem>>, vector<1x1xf32>
      tpu.vector_store %arg10[%c0_25, %c0_26], %47 {strides = array<i32>} : memref<1x1xf32, #tpu.memory_space<vmem>>, vector<1x1xf32>,
    } else {
    }
    return
  }
  func.func @transform_0(%arg0: i32) -> i32 {
    %c0_i32 = arith.constant 0 : i32
    %c0_i32_0 = arith.constant 0 : i32
    return %c0_i32 : i32
  }
  func.func @transform_1(%arg0: i32) -> i32 {
    %c0_i32 = arith.constant 0 : i32
    %c0_i32_0 = arith.constant 0 : i32
    return %c0_i32 : i32
  }
  func.func @transform_2(%arg0: i32) -> (i32, i32) {
    %c0_i32 = arith.constant 0 : i32
    %c0_i32_0 = arith.constant 0 : i32
    return %c0_i32, %arg0 : i32, i32
  }
  func.func @transform_3(%arg0: i32) -> (i32, i32) {
    %c0_i32 = arith.constant 0 : i32
    %c0_i32_0 = arith.constant 0 : i32
    return %c0_i32, %arg0 : i32, i32
  }
  func.func @transform_4(%arg0: i32) -> (i32, i32) {
    %c0_i32 = arith.constant 0 : i32
    %c0_i32_0 = arith.constant 0 : i32
    return %c0_i32, %arg0 : i32, i32
  }
  func.func @transform_5(%arg0: i32) -> (i32, i32) {
    %c0_i32 = arith.constant 0 : i32
    %c0_i32_0 = arith.constant 0 : i32
    return %c0_i32, %arg0 : i32, i32
  }
  func.func @transform_6(%arg0: i32) -> (i32, i32) {
    %c0_i32 = arith.constant 0 : i32
    %c0_i32_0 = arith.constant 0 : i32
    return %c0_i32, %arg0 : i32, i32
  }
  func.func @transform_7(%arg0: i32) -> (i32, i32) {
    %c0_i32 = arith.constant 0 : i32
    %c0_i32_0 = arith.constant 0 : i32
    return %c0_i32, %arg0 : i32, i32
  }
  func.func @transform_8(%arg0: i32) -> (i32, i32) {
    %c0_i32 = arith.constant 0 : i32
    %c0_i32_0 = arith.constant 0 : i32
    return %c0_i32, %arg0 : i32, i32
  }
  func.func @transform_9(%arg0: i32) -> (i32, i32) {
    %c0_i32 = arith.constant 0 : i32
    %c0_i32_0 = arith.constant 0 : i32
    %c0_i32_1 = arith.constant 0 : i32
    return %c0_i32, %c0_i32_0 : i32, i32
  }
}

</mosaic_0001>

<llo_original>
// kernel: tpu_custom_call.1
$region0: #{tpu_custom_call.1}
  #allocation0 [shape = 'u32[]', space=smem, size = 0x4, offset = 0x4, fixed_abs, tag = 'smem constant byte address 0x4 - core index']
  #allocation1 [shape = 'u32[144,128]{1,0:T(1,128)}', space=vmem, size = 0x12000, scoped, tag = 'internal scratch']
  #allocation2 [shape = 'f32[1,128]{1,0:T(1,128)}', space=vmem, size = 0x200, scoped, tag = 'scratch operand']
  #allocation3 [shape = 'f32[1]{0:T(128)S(6)}', space=smem, size = 0x200, scoped, tag = 'scoped memory for tpu_custom_call.1']
  %s0 = inlined_call_operand.vmem [shape: f32[5], index: 0, kind: input, shape index: {}]
  %s1 = inlined_call_operand.<no memory space> [shape: f32[1], index: 1, kind: input, shape index: {}]
  %s2 = inlined_call_operand.vmem [shape: f32[1,128], index: 2, kind: input, shape index: {}]
  %s3 = inlined_call_operand.vmem [shape: f32[1,128], index: 3, kind: input, shape index: {}]
  %s4 = inlined_call_operand.vmem [shape: f32[1,128], index: 4, kind: input, shape index: {}]
  %s5 = inlined_call_operand.vmem [shape: f32[1,128], index: 5, kind: input, shape index: {}]
  %s6 = inlined_call_operand.vmem [shape: f32[1,128], index: 6, kind: input, shape index: {}]
  %s7 = inlined_call_operand.vmem [shape: f32[1,128], index: 7, kind: input, shape index: {}]
  %s8 = inlined_call_operand.hbm [shape: f32[1,128], index: 8, kind: output, shape index: {0}]
  %s9 = inlined_call_operand.hbm [shape: f32[1,1], index: 9, kind: output, shape index: {1}]
  %10 = xla_tuple %s8, %s9
  %s11 = sld [smem:[#allocation0]]
  $region62: #{tpu_custom_call.1} parent=0
    _
  %s13 = ssub.s32 1, %s11
  %s14 = scalar_select 0, %s13, %s11
  %15 = sst [smem:[#allocation3]] %s1
  $region1: #{tpu_custom_call.1} parent=0
    #allocation4 [shape = 'u8[512]{0}', space=smem, size = 0x200, scoped, tag = 'input window, operand 0, single buffered']
    #allocation5 [shape = 's32[1]{0}', space=sflag, size = 0x4, scoped, tag = 'scoped memory for tpu_custom_call.1']
    #allocation6 [shape = 's32[1]{0}', space=sflag, size = 0x4, scoped, tag = 'scoped memory for tpu_custom_call.1']
    #allocation7 [shape = 'u8[512]{0}', space=vmem, size = 0x400, scoped, tag = 'output window, operand 0, single buffered']
    #allocation8 [shape = 'u8[512]{0}', space=vmem, size = 0x400, scoped, tag = 'output window, operand 1, single buffered']
    #allocation9 [shape = 's32[1]{0}', space=sflag, size = 0x4, scoped, tag = 'scoped memory for tpu_custom_call.1']
    %16 = vsyncpa [#allocation6], 0
    %17 = vsyncpa [#allocation5], 0
    %18 = vsyncpa [#allocation9], 0
    // Predicated region
    $region2: #{tpu_custom_call.1} parent=1 // pred_check
      _
    $region3: #{tpu_custom_call.1} parent=1 // pred_check_branch
      %20 = sbr.rel (0) target = $region5
    $region4: #{tpu_custom_call.1} parent=1 // pred_region
      %s22 = ssub.s32 16, 16
      %23 = vsyncadd [#allocation6], %s22
      %s25 = sshll.u32 %s0, 4
      %s26 = int_to_ptr.vmem [resolvable:$true] %s25
      %28 = dma.vmem_to_smem %s26, 16, [#allocation4], [#allocation6]
    $region5: #{tpu_custom_call.1} parent=1 // pred_fallthru
      _
    // Predicated region
    $region6: #{tpu_custom_call.1} parent=1 // pred_check
      _
    $region7: #{tpu_custom_call.1} parent=1 // pred_check_branch
      %30 = sbr.rel (0) target = $region9
    $region8: #{tpu_custom_call.1} parent=1 // pred_region
      _
    $region9: #{tpu_custom_call.1} parent=1 // pred_fallthru
      _
    // Predicated region
    $region10: #{tpu_custom_call.1} parent=1 // pred_check
      _
    $region11: #{tpu_custom_call.1} parent=1 // pred_check_branch
      %32 = sbr.rel (0) target = $region13
    $region12: #{tpu_custom_call.1} parent=1 // pred_region
      _
    $region13: #{tpu_custom_call.1} parent=1 // pred_fallthru
      _
    // Predicated region
    $region14: #{tpu_custom_call.1} parent=1 // pred_check
      _
    $region15: #{tpu_custom_call.1} parent=1 // pred_check_branch
      %34 = sbr.rel (0) target = $region17
    $region16: #{tpu_custom_call.1} parent=1 // pred_region
      _
    $region17: #{tpu_custom_call.1} parent=1 // pred_fallthru
      _
    // Predicated region
    $region18: #{tpu_custom_call.1} parent=1 // pred_check
      _
    $region19: #{tpu_custom_call.1} parent=1 // pred_check_branch
      %36 = sbr.rel (0) target = $region21
    $region20: #{tpu_custom_call.1} parent=1 // pred_region
      _
    $region21: #{tpu_custom_call.1} parent=1 // pred_fallthru
      _
    // Predicated region
    $region22: #{tpu_custom_call.1} parent=1 // pred_check
      _
    $region23: #{tpu_custom_call.1} parent=1 // pred_check_branch
      %38 = sbr.rel (0) target = $region25
    $region24: #{tpu_custom_call.1} parent=1 // pred_region
      _
    $region25: #{tpu_custom_call.1} parent=1 // pred_fallthru
      _
    // Predicated region
    $region26: #{tpu_custom_call.1} parent=1 // pred_check
      _
    $region27: #{tpu_custom_call.1} parent=1 // pred_check_branch
      %40 = sbr.rel (0) target = $region29
    $region28: #{tpu_custom_call.1} parent=1 // pred_region
      _
    $region29: #{tpu_custom_call.1} parent=1 // pred_fallthru
      _
    // Predicated region
    $region30: #{tpu_custom_call.1} parent=1 // pred_check
      _
    $region31: #{tpu_custom_call.1} parent=1 // pred_check_branch
      %42 = sbr.rel (0) target = $region33
    $region32: #{tpu_custom_call.1} parent=1 // pred_region
      _
    $region33: #{tpu_custom_call.1} parent=1 // pred_fallthru
      _
    // Predicated region
    $region34: #{tpu_custom_call.1} parent=1 // pred_check
      _
    $region35: #{tpu_custom_call.1} parent=1 // pred_check_branch
      %44 = sbr.rel (0) target = $region37
    $region36: #{tpu_custom_call.1} parent=1 // pred_region
      %45 = dma.done [#allocation6], 16
    $region37: #{tpu_custom_call.1} parent=1 // pred_fallthru
      _
    %46 = sfence
    %p47 = scmp.eq.s32.totalorder 0, 0
    // Predicated region
    $region38: #{tpu_custom_call.1} parent=1 // pred_check
      %p48 = pneg %p47
    $region39: #{tpu_custom_call.1} parent=1 // pred_check_branch
      %50 = sbr.rel (%p48) target = $region41
    $region40: #{tpu_custom_call.1} parent=1 // pred_region
      %51 = vst [vmem:[#allocation2] sm:$0x1] 0.0
    $region41: #{tpu_custom_call.1} parent=1 // pred_fallthru
      _
    %s52 = sld [smem:[#allocation4]]
    %v53 = vld [vmem:[%s2] sm:$0x1]
    %v54 = vstv %s52
    %v55 = vmul.f32 %v54, %v53
    %s56 = sld [smem:[#allocation4 + $0x1]]
    %v57 = vld [vmem:[%s3] sm:$0x1]
    %v58 = vstv %s56
    %v59 = vmul.f32 %v58, %v57
    %v60 = vadd.f32 %v55, %v59
    %s61 = sld [smem:[#allocation4 + $0x2]]
    %v62 = vld [vmem:[%s4] sm:$0x1]
    %v63 = vstv %s61
    %v64 = vmul.f32 %v63, %v62
    %v65 = vadd.f32 %v60, %v64
    %s66 = sld [smem:[#allocation4 + $0x3]]
    %v67 = vld [vmem:[%s5] sm:$0x1]
    %v68 = vstv %s66
    %v69 = vmul.f32 %v68, %v67
    %v70 = vadd.f32 %v65, %v69
    %s71 = sld [smem:[#allocation4 + $0x4]]
    %v72 = vld [vmem:[%s6] sm:$0x1]
    %v73 = vstv %s71
    %v74 = vmul.f32 %v73, %v72
    %v75 = vadd.f32 %v70, %v74
    %v76 = vmul.f32 %v75, 1.442695
    %v77 = vpow.pop %v76
    %s78 = sld [smem:[#allocation3]]
    %v79 = vstv %s78
    %v80 = vadd.f32 %v77, %v79
    %81 = vst [vmem:[#allocation7] sm:$0x1] %v80
    %v82 = vld [vmem:[#allocation2] sm:$0x1]
    %v83 = vld [vmem:[%s7] sm:$0x1]
    %v84 = vmul.f32 %v80, %v83
    %v85 = vadd.f32 %v82, %v84
    %86 = vst [vmem:[#allocation2] sm:$0x1] %v85
    // Predicated region
    $region42: #{tpu_custom_call.1} parent=1 // pred_check
      %p87 = pneg %p47
    $region43: #{tpu_custom_call.1} parent=1 // pred_check_branch
      %89 = sbr.rel (%p87) target = $region45
    $region44: #{tpu_custom_call.1} parent=1 // pred_region
      %v90 = vld [vmem:[#allocation2] sm:$0x1]
      %vm91 = vcmask 1040384
      %v92 = vsel %vm91, %v90, 0.0
      %93 = vadd.xlane.f32.xlu0 %v92
      %v94 = vpop.xlane.xlu0 %93
      %v95 = vrot.slane %v94, 4
      %v96 = vadd.f32 %v94, %v95
      %v97 = vrot.slane %v96, 2
      %v98 = vadd.f32 %v96, %v97
      %v99 = vrot.slane %v98, 1
      %v100 = vadd.f32 %v98, %v99
      %s101 = vtos %v100
      %v102 = vstv %s101
      %v103 = vmul.f32 %v102, 3.125e-05
      %vm104 = vcmask 0
      %105 = vst.msk [vmem:[#allocation8] sm:$0x1] %vm104, %v103
    $region45: #{tpu_custom_call.1} parent=1 // pred_fallthru
      _
    // Predicated region
    $region46: #{tpu_custom_call.1} parent=1 // pred_check
      _
    $region47: #{tpu_custom_call.1} parent=1 // pred_check_branch
      %107 = sbr.rel (0) target = $region49
    $region48: #{tpu_custom_call.1} parent=1 // pred_region
      %s109 = ssub.s32 16, 16
      %110 = vsyncadd [#allocation5], %s109
      %s112 = sshll.u32 [#allocation7], 4
      %s113 = int_to_ptr.vmem [resolvable:$true] %s112
      %115 = dma.vmem_to_hbm [thread:$0]  %s113, 16, %s8, [#allocation5]
    $region49: #{tpu_custom_call.1} parent=1 // pred_fallthru
      _
    // Predicated region
    $region50: #{tpu_custom_call.1} parent=1 // pred_check
      _
    $region51: #{tpu_custom_call.1} parent=1 // pred_check_branch
      %117 = sbr.rel (0) target = $region53
    $region52: #{tpu_custom_call.1} parent=1 // pred_region
      %s119 = ssub.s32 16, 16
      %120 = vsyncadd [#allocation9], %s119
      %s122 = sshll.u32 [#allocation8], 4
      %s123 = int_to_ptr.vmem [resolvable:$true] %s122
      %125 = dma.vmem_to_hbm [thread:$0]  %s123, 16, %s9, [#allocation9]
    $region53: #{tpu_custom_call.1} parent=1 // pred_fallthru
      _
    // Predicated region
    $region54: #{tpu_custom_call.1} parent=1 // pred_check
      _
    $region55: #{tpu_custom_call.1} parent=1 // pred_check_branch
      %127 = sbr.rel (0) target = $region57
    $region56: #{tpu_custom_call.1} parent=1 // pred_region
      %128 = dma.done [#allocation5], 16
    $region57: #{tpu_custom_call.1} parent=1 // pred_fallthru
      _
    // Predicated region
    $region58: #{tpu_custom_call.1} parent=1 // pred_check
      _
    $region59: #{tpu_custom_call.1} parent=1 // pred_check_branch
      %130 = sbr.rel (0) target = $region61
    $region60: #{tpu_custom_call.1} parent=1 // pred_region
      %131 = dma.done [#allocation9], 16
    $region61: #{tpu_custom_call.1} parent=1 // pred_fallthru
      _
    %132 = vsyncpa [#allocation5], 1
    %133 = vsyncpa [#allocation9], 1
    %134 = vsyncpa [#allocation6], 1

</llo_original>
